<compile_context>
chip_gen: v5e
topology: v5e:2x2
jax: 0.10.0
libtpu: 0.0.40
codegen_flags: <defaults>
</compile_context>

<pallas_src>
import jax
import jax.numpy as jnp
from jax import lax
from jax.experimental import pallas as pl
from jax.experimental.pallas import tpu as pltpu


def _round_up(a: int, b: int) -> int:
    return (a + b - 1) // b * b


def residual_mlp_kernel(x_ref, w1t_ref, b1_ref, w2t_ref, b2_ref,
                        gamma_ref, beta_ref, o_ref):
    x = x_ref[...]                                            # (TILE_B, fan_in) f32

    # l1: Linear(fan_in -> hidden) + ReLU (MXU, f32 accumulate)
    h = jnp.dot(x, w1t_ref[...], preferred_element_type=jnp.float32)
    h = jnp.maximum(h + b1_ref[...], 0.0)                     # (TILE_B, hidden)

    # l2: Linear(hidden -> fan_in)
    mlp = jnp.dot(h, w2t_ref[...], preferred_element_type=jnp.float32)
    mlp = mlp + b2_ref[...]                                   # (TILE_B, fan_in)

    # dropout(p=0.1): identity in eval mode (inference semantics)
    z = x + mlp

    # Fused LayerNorm over last dim, eps = 1e-5 (PyTorch default).
    # One pass: sum and sum-of-squares -> var = E[z^2] - mean^2.
    inv_n = 1.0 / z.shape[-1]
    s1 = jnp.sum(z, axis=-1, keepdims=True)
    s2 = jnp.sum(z * z, axis=-1, keepdims=True)
    mean = s1 * inv_n
    var = jnp.maximum(s2 * inv_n - mean * mean, 0.0)
    zn = (z - mean) * lax.rsqrt(var + 1e-5)

    o_ref[...] = (zn * gamma_ref[...] + beta_ref[...]).astype(o_ref.dtype)


def residual_mlp_layer(x, params, *, tile_b=None):
    """x: (B, fan_in) float32. params: dict of layer weights (PyTorch layout)."""
    B, fan_in = x.shape
    hidden = params["w1"].shape[0]
    itemsize = 4  # f32

    # Present weights in matmul-friendly (in, out) layout, biases/affine as 2D rows.
    w1t = params["w1"].T                      # (fan_in, hidden)
    w2t = params["w2"].T                      # (hidden, fan_in)
    b1 = params["b1"].reshape(1, hidden)
    b2 = params["b2"].reshape(1, fan_in)
    gamma = params["gamma"].reshape(1, fan_in)
    beta = params["beta"].reshape(1, fan_in)

    # --- Batch tile selection: largest multiple of 8 (<= 512) fitting a ~40 MiB
    # working-set budget (safe on v7x's 64 MiB VMEM, generous on v5e/v6e).
    resident_bytes = (2 * fan_in * hidden + 2 * hidden + 6 * fan_in) * itemsize
    if tile_b is None:
        budget = 40 * 1024 * 1024
        per_row = (2 * (2 * fan_in) + hidden) * itemsize   # dbl-buffered x/out + hidden act
        tile_b = (max(budget - 2 * resident_bytes, 0) // max(per_row, 1)) // 8 * 8
        tile_b = max(8, min(512, tile_b))
    tile_b = max(8, min(tile_b, _round_up(B, 8)))

    # Pad batch so the grid tiles it exactly (padded rows are sliced off below).
    Bp = _round_up(B, tile_b)
    x_p = x if Bp == B else jnp.zeros((Bp, fan_in), x.dtype).at[:B].set(x)
    grid = (pl.cdiv(Bp, tile_b),)

    # Derived VMEM limit: resident params (x2 buffers) + pipelined x/out tiles
    # (x2 each) + hidden activation + slack.
    tile_bytes = tile_b * (2 * fan_in + hidden) * itemsize
    vmem_limit = int(min(max(2 * resident_bytes + 2 * tile_bytes + (4 << 20),
                             16 << 20), 64 << 20))

    # Advisory cost estimate for XLA scheduling around the custom call.
    cost = pl.CostEstimate(
        flops=4 * Bp * fan_in * hidden + 8 * Bp * fan_in,
        transcendentals=Bp,
        bytes_accessed=(2 * Bp * fan_in + 2 * fan_in * hidden
                        + 2 * hidden + 6 * fan_in) * itemsize,
    )

    tiled = lambda shape: pl.BlockSpec(shape, lambda i: (i, 0))        # follows batch grid
    resident = lambda shape: pl.BlockSpec(shape, lambda i: (0, 0))     # constant block -> stays in VMEM

    out_p = pl.pallas_call(
        residual_mlp_kernel,
        out_shape=jax.ShapeDtypeStruct((Bp, fan_in), x.dtype),
        grid=grid,
        in_specs=[
            tiled((tile_b, fan_in)),       # x
            resident((fan_in, hidden)),    # w1^T
            resident((1, hidden)),         # b1
            resident((hidden, fan_in)),    # w2^T
            resident((1, fan_in)),         # b2
            resident((1, fan_in)),         # gamma
            resident((1, fan_in)),         # beta
        ],
        out_specs=tiled((tile_b, fan_in)),
        compiler_params=pltpu.CompilerParams(
            dimension_semantics=("parallel",),
            vmem_limit_bytes=vmem_limit,
        ),
        cost_estimate=cost,
    )(x_p, w1t, b1, w2t, b2, gamma, beta)

    return out_p[:B] if Bp != B else out_p


def init_params(key, fan_in, hidden):
    """Deterministic PyTorch-style (uniform +-1/sqrt(fan_in)) init."""
    k1, k2, k3, k4 = jax.random.split(key, 4)
    lim1 = 1.0 / (fan_in ** 0.5)
    lim2 = 1.0 / (hidden ** 0.5)
    return {
        "w1": jax.random.uniform(k1, (hidden, fan_in), jnp.float32, -lim1, lim1),
        "b1": jax.random.uniform(k2, (hidden,), jnp.float32, -lim1, lim1),
        "w2": jax.random.uniform(k3, (fan_in, hidden), jnp.float32, -lim2, lim2),
        "b2": jax.random.uniform(k4, (fan_in,), jnp.float32, -lim2, lim2),
        "gamma": jnp.ones((fan_in,), jnp.float32),
        "beta": jnp.zeros((fan_in,), jnp.float32),
    }


def reference(x, params):
    h = jnp.maximum(x @ params["w1"].T + params["b1"], 0.0)
    mlp = h @ params["w2"].T + params["b2"]
    z = x + mlp
    mean = jnp.mean(z, axis=-1, keepdims=True)
    var = jnp.mean((z - mean) ** 2, axis=-1, keepdims=True)
    zn = (z - mean) / jnp.sqrt(var + 1e-5)
    return zn * params["gamma"] + params["beta"]


if __name__ == "__main__":
    B, FAN_IN, HIDDEN = 8, 32, 64   # small toy shapes consistent with the module

    key = jax.random.PRNGKey(0)
    kx, kp = jax.random.split(key)
    x = jax.random.normal(kx, (B, FAN_IN), jnp.float32)
    params = init_params(kp, FAN_IN, HIDDEN)

    out = residual_mlp_layer(x, params)
    out = jax.block_until_ready(out)

    ref = reference(x, params)
    assert out.shape == (B, FAN_IN)
    assert jnp.allclose(out, ref, atol=1e-4, rtol=1e-4), "mismatch vs reference"

    # Also exercise a batch that needs padding / multiple grid steps.
    x2 = jax.random.normal(kx, (37, FAN_IN), jnp.float32)
    out2 = jax.block_until_ready(residual_mlp_layer(x2, params, tile_b=16))
    assert jnp.allclose(out2, reference(x2, params), atol=1e-4, rtol=1e-4)

    print("KERNEL_OK")
</pallas_src>

<mosaic_0001>
module attributes {stable_mosaic.version = 11 : i64} {
  func.func @residual_mlp_kernel(%arg0: i32, %arg1: memref<8x32xf32, #tpu.memory_space<vmem>>, %arg2: memref<32x64xf32, #tpu.memory_space<vmem>>, %arg3: memref<1x64xf32, #tpu.memory_space<vmem>>, %arg4: memref<64x32xf32, #tpu.memory_space<vmem>>, %arg5: memref<1x32xf32, #tpu.memory_space<vmem>>, %arg6: memref<1x32xf32, #tpu.memory_space<vmem>>, %arg7: memref<1x32xf32, #tpu.memory_space<vmem>>, %arg8: memref<8x32xf32, #tpu.memory_space<vmem>>) attributes {dimension_semantics = [#tpu.dimension_semantics<parallel>], iteration_bounds = array<i64: 1>, scalar_prefetch = 0 : i64, scratch_operands = 0 : i64, tpu.core_type = #tpu.core_type<tc>, window_params = [{transform_indices = @transform_0, window_bounds = array<i64: 8, 32>}, {pipeline_mode = #tpu.pipeline_mode<synchronous>, transform_indices = @transform_1, window_bounds = array<i64: 32, 64>}, {pipeline_mode = #tpu.pipeline_mode<synchronous>, transform_indices = @transform_2, window_bounds = array<i64: 1, 64>}, {pipeline_mode = #tpu.pipeline_mode<synchronous>, transform_indices = @transform_3, window_bounds = array<i64: 64, 32>}, {pipeline_mode = #tpu.pipeline_mode<synchronous>, transform_indices = @transform_4, window_bounds = array<i64: 1, 32>}, {pipeline_mode = #tpu.pipeline_mode<synchronous>, transform_indices = @transform_5, window_bounds = array<i64: 1, 32>}, {pipeline_mode = #tpu.pipeline_mode<synchronous>, transform_indices = @transform_6, window_bounds = array<i64: 1, 32>}, {transform_indices = @transform_7, window_bounds = array<i64: 8, 32>}]} {
    %c0 = arith.constant 0 : index
    %c0_0 = arith.constant 0 : index
    %0 = vector.load %arg1[%c0, %c0_0] : memref<8x32xf32, #tpu.memory_space<vmem>>, vector<8x32xf32>
    %c0_1 = arith.constant 0 : index
    %c0_2 = arith.constant 0 : index
    %1 = vector.load %arg2[%c0_1, %c0_2] : memref<32x64xf32, #tpu.memory_space<vmem>>, vector<32x64xf32>
    %cst = arith.constant dense<0.000000e+00> : vector<8x64xf32>
    %2 = tpu.matmul %0, %1, %cst {dimension_numbers = #tpu.dot_dimension_numbers<[1], [0], [0], [1], [0, 0, 1, 1], [], []>} : vector<8x32xf32>, vector<32x64xf32>, vector<8x64xf32> -> vector<8x64xf32>
    %c0_3 = arith.constant 0 : index
    %c0_4 = arith.constant 0 : index
    %3 = vector.load %arg3[%c0_3, %c0_4] : memref<1x64xf32, #tpu.memory_space<vmem>>, vector<1x64xf32>
    %4 = vector.broadcast %3 : vector<1x64xf32> to vector<8x64xf32>
    %5 = arith.addf %2, %4 : vector<8x64xf32>
    %cst_5 = arith.constant 0.000000e+00 : f32
    %6 = vector.broadcast %cst_5 : f32 to vector<8x64xf32>
    %7 = arith.maximumf %5, %6 : vector<8x64xf32>
    %c0_6 = arith.constant 0 : index
    %c0_7 = arith.constant 0 : index
    %8 = vector.load %arg4[%c0_6, %c0_7] : memref<64x32xf32, #tpu.memory_space<vmem>>, vector<64x32xf32>
    %cst_8 = arith.constant dense<0.000000e+00> : vector<8x32xf32>
    %9 = tpu.matmul %7, %8, %cst_8 {dimension_numbers = #tpu.dot_dimension_numbers<[1], [0], [0], [1], [0, 0, 1, 1], [], []>} : vector<8x64xf32>, vector<64x32xf32>, vector<8x32xf32> -> vector<8x32xf32>
    %c0_9 = arith.constant 0 : index
    %c0_10 = arith.constant 0 : index
    %10 = vector.load %arg5[%c0_9, %c0_10] : memref<1x32xf32, #tpu.memory_space<vmem>>, vector<1x32xf32>
    %11 = vector.broadcast %10 : vector<1x32xf32> to vector<8x32xf32>
    %12 = arith.addf %9, %11 : vector<8x32xf32>
    %13 = arith.addf %0, %12 : vector<8x32xf32>
    %cst_11 = arith.constant dense<0.000000e+00> : vector<8xf32>
    %14 = vector.multi_reduction <add>, %13, %cst_11 [1] : vector<8x32xf32> to vector<8xf32>
    %15 = vector.shape_cast %14 : vector<8xf32> to vector<8x1xf32>
    %16 = arith.mulf %13, %13 : vector<8x32xf32>
    %cst_12 = arith.constant dense<0.000000e+00> : vector<8xf32>
    %17 = vector.multi_reduction <add>, %16, %cst_12 [1] : vector<8x32xf32> to vector<8xf32>
    %18 = vector.shape_cast %17 : vector<8xf32> to vector<8x1xf32>
    %cst_13 = arith.constant 3.125000e-02 : f32
    %19 = vector.broadcast %cst_13 : f32 to vector<8x1xf32>
    %20 = arith.mulf %15, %19 : vector<8x1xf32>
    %cst_14 = arith.constant 3.125000e-02 : f32
    %21 = vector.broadcast %cst_14 : f32 to vector<8x1xf32>
    %22 = arith.mulf %18, %21 : vector<8x1xf32>
    %23 = arith.mulf %20, %20 : vector<8x1xf32>
    %24 = arith.subf %22, %23 : vector<8x1xf32>
    %cst_15 = arith.constant 0.000000e+00 : f32
    %25 = vector.broadcast %cst_15 : f32 to vector<8x1xf32>
    %26 = arith.maximumf %24, %25 : vector<8x1xf32>
    %27 = vector.broadcast %20 : vector<8x1xf32> to vector<8x32xf32>
    %28 = arith.subf %13, %27 : vector<8x32xf32>
    %cst_16 = arith.constant 9.99999974E-6 : f32
    %29 = vector.broadcast %cst_16 : f32 to vector<8x1xf32>
    %30 = arith.addf %26, %29 : vector<8x1xf32>
    %31 = math.rsqrt %30 : vector<8x1xf32>
    %32 = vector.broadcast %31 : vector<8x1xf32> to vector<8x32xf32>
    %33 = arith.mulf %28, %32 : vector<8x32xf32>
    %c0_17 = arith.constant 0 : index
    %c0_18 = arith.constant 0 : index
    %34 = vector.load %arg6[%c0_17, %c0_18] : memref<1x32xf32, #tpu.memory_space<vmem>>, vector<1x32xf32>
    %35 = vector.broadcast %34 : vector<1x32xf32> to vector<8x32xf32>
    %36 = arith.mulf %33, %35 : vector<8x32xf32>
    %c0_19 = arith.constant 0 : index
    %c0_20 = arith.constant 0 : index
    %37 = vector.load %arg7[%c0_19, %c0_20] : memref<1x32xf32, #tpu.memory_space<vmem>>, vector<1x32xf32>
    %38 = vector.broadcast %37 : vector<1x32xf32> to vector<8x32xf32>
    %39 = arith.addf %36, %38 : vector<8x32xf32>
    %c0_21 = arith.constant 0 : index
    %c0_22 = arith.constant 0 : index
    %40 = vector.load %arg8[%c0_21, %c0_22] : memref<8x32xf32, #tpu.memory_space<vmem>>, vector<8x32xf32>
    tpu.vector_store %arg8[%c0_21, %c0_22], %39 {strides = array<i32>} : memref<8x32xf32, #tpu.memory_space<vmem>>, vector<8x32xf32>,
    return
  }
  func.func @transform_0(%arg0: i32) -> (i32, i32) {
    %c0_i32 = arith.constant 0 : i32
    %c0_i32_0 = arith.constant 0 : i32
    return %arg0, %c0_i32 : i32, i32
  }
  func.func @transform_1(%arg0: i32) -> (i32, i32) {
    %c0_i32 = arith.constant 0 : i32
    %c0_i32_0 = arith.constant 0 : i32
    %c0_i32_1 = arith.constant 0 : i32
    return %c0_i32, %c0_i32_0 : i32, i32
  }
  func.func @transform_2(%arg0: i32) -> (i32, i32) {
    %c0_i32 = arith.constant 0 : i32
    %c0_i32_0 = arith.constant 0 : i32
    %c0_i32_1 = arith.constant 0 : i32
    return %c0_i32, %c0_i32_0 : i32, i32
  }
  func.func @transform_3(%arg0: i32) -> (i32, i32) {
    %c0_i32 = arith.constant 0 : i32
    %c0_i32_0 = arith.constant 0 : i32
    %c0_i32_1 = arith.constant 0 : i32
    return %c0_i32, %c0_i32_0 : i32, i32
  }
  func.func @transform_4(%arg0: i32) -> (i32, i32) {
    %c0_i32 = arith.constant 0 : i32
    %c0_i32_0 = arith.constant 0 : i32
    %c0_i32_1 = arith.constant 0 : i32
    return %c0_i32, %c0_i32_0 : i32, i32
  }
  func.func @transform_5(%arg0: i32) -> (i32, i32) {
    %c0_i32 = arith.constant 0 : i32
    %c0_i32_0 = arith.constant 0 : i32
    %c0_i32_1 = arith.constant 0 : i32
    return %c0_i32, %c0_i32_0 : i32, i32
  }
  func.func @transform_6(%arg0: i32) -> (i32, i32) {
    %c0_i32 = arith.constant 0 : i32
    %c0_i32_0 = arith.constant 0 : i32
    %c0_i32_1 = arith.constant 0 : i32
    return %c0_i32, %c0_i32_0 : i32, i32
  }
  func.func @transform_7(%arg0: i32) -> (i32, i32) {
    %c0_i32 = arith.constant 0 : i32
    %c0_i32_0 = arith.constant 0 : i32
    return %arg0, %c0_i32 : i32, i32
  }
}

</mosaic_0001>

<llo_original>
// kernel: tpu_custom_call.1
$region0: #{tpu_custom_call.1}
  #allocation0 [shape = 'u32[]', space=smem, size = 0x4, offset = 0x4, fixed_abs, tag = 'smem constant byte address 0x4 - core index']
  #allocation1 [shape = 'u32[72,128]{1,0:T(1,128)}', space=vmem, size = 0x9000, scoped, tag = 'internal scratch']
  %s0 = inlined_call_operand.vmem [shape: f32[8,32], index: 0, kind: input, shape index: {}]
  %s1 = inlined_call_operand.vmem [shape: f32[32,64], index: 1, kind: input, shape index: {}]
  %s2 = inlined_call_operand.vmem [shape: f32[1,64], index: 2, kind: input, shape index: {}]
  %s3 = inlined_call_operand.vmem [shape: f32[64,32], index: 3, kind: input, shape index: {}]
  %s4 = inlined_call_operand.vmem [shape: f32[1,32], index: 4, kind: input, shape index: {}]
  %s5 = inlined_call_operand.vmem [shape: f32[1,32], index: 5, kind: input, shape index: {}]
  %s6 = inlined_call_operand.vmem [shape: f32[1,32], index: 6, kind: input, shape index: {}]
  %s7 = inlined_call_operand.hbm [shape: f32[8,32], index: 7, kind: output, shape index: {}]
  %s8 = sld [smem:[#allocation0]]
  $region38: #{tpu_custom_call.1} parent=0
    _
  %s10 = ssub.s32 1, %s8
  %s11 = scalar_select 0, %s10, %s8
  $region1: #{tpu_custom_call.1} parent=0
    #allocation2 [shape = 'u8[4096]{0}', space=vmem, size = 0x1000, scoped, tag = 'output window, operand 0, single buffered']
    #allocation3 [shape = 's32[1]{0}', space=sflag, size = 0x4, scoped, tag = 'scoped memory for tpu_custom_call.1']
    %12 = vsyncpa [#allocation3], 0
    // Predicated region
    $region2: #{tpu_custom_call.1} parent=1 // pred_check
      _
    $region3: #{tpu_custom_call.1} parent=1 // pred_check_branch
      %14 = sbr.rel (0) target = $region5
    $region4: #{tpu_custom_call.1} parent=1 // pred_region
      _
    $region5: #{tpu_custom_call.1} parent=1 // pred_fallthru
      _
    // Predicated region
    $region6: #{tpu_custom_call.1} parent=1 // pred_check
      _
    $region7: #{tpu_custom_call.1} parent=1 // pred_check_branch
      %16 = sbr.rel (0) target = $region9
    $region8: #{tpu_custom_call.1} parent=1 // pred_region
      _
    $region9: #{tpu_custom_call.1} parent=1 // pred_fallthru
      _
    // Predicated region
    $region10: #{tpu_custom_call.1} parent=1 // pred_check
      _
    $region11: #{tpu_custom_call.1} parent=1 // pred_check_branch
      %18 = sbr.rel (0) target = $region13
    $region12: #{tpu_custom_call.1} parent=1 // pred_region
      _
    $region13: #{tpu_custom_call.1} parent=1 // pred_fallthru
      _
    // Predicated region
    $region14: #{tpu_custom_call.1} parent=1 // pred_check
      _
    $region15: #{tpu_custom_call.1} parent=1 // pred_check_branch
      %20 = sbr.rel (0) target = $region17
    $region16: #{tpu_custom_call.1} parent=1 // pred_region
      _
    $region17: #{tpu_custom_call.1} parent=1 // pred_fallthru
      _
    // Predicated region
    $region18: #{tpu_custom_call.1} parent=1 // pred_check
      _
    $region19: #{tpu_custom_call.1} parent=1 // pred_check_branch
      %22 = sbr.rel (0) target = $region21
    $region20: #{tpu_custom_call.1} parent=1 // pred_region
      _
    $region21: #{tpu_custom_call.1} parent=1 // pred_fallthru
      _
    // Predicated region
    $region22: #{tpu_custom_call.1} parent=1 // pred_check
      _
    $region23: #{tpu_custom_call.1} parent=1 // pred_check_branch
      %24 = sbr.rel (0) target = $region25
    $region24: #{tpu_custom_call.1} parent=1 // pred_region
      _
    $region25: #{tpu_custom_call.1} parent=1 // pred_fallthru
      _
    // Predicated region
    $region26: #{tpu_custom_call.1} parent=1 // pred_check
      _
    $region27: #{tpu_custom_call.1} parent=1 // pred_check_branch
      %26 = sbr.rel (0) target = $region29
    $region28: #{tpu_custom_call.1} parent=1 // pred_region
      _
    $region29: #{tpu_custom_call.1} parent=1 // pred_fallthru
      _
    %v27 = vld [vmem:[%s0] sm:$0xff]
    %v28 = vld [vmem:[%s1] sm:$0xff]
    %v29 = vld [vmem:[%s1 + $0x8] sm:$0xff]
    %v30 = vld [vmem:[%s1 + $0x10] sm:$0xff]
    %v31 = vld [vmem:[%s1 + $0x18] sm:$0xff]
    %v32 = vld [vmem:[%s2] sm:$0x1]
    %v34 = vperm.slane %v32, 0
    %vm36 = vcmask 261120
    %v38 = vsel %vm36, %v27, 0
    %40 = vmatpush.msra.mxu0 0.0
    %41 = vmatpush.msra.mxu0 0.0
    %42 = vmatpush.msra.mxu0 0.0
    %43 = vmatpush.msra.mxu0 0.0
    %44 = vmatpush.msra.mxu0 0.0
    %45 = vmatpush.msra.mxu0 0.0
    %46 = vmatpush.msra.mxu0 0.0
    %47 = vmatpush.msra.mxu0 0.0
    %48 = vmatpush.msra.mxu0 0.0
    %49 = vmatpush.msra.mxu0 0.0
    %50 = vmatpush.msra.mxu0 0.0
    %51 = vmatpush.msra.mxu0 0.0
    %52 = vmatpush.msra.mxu0 %v31
    %53 = vmatpush.msra.mxu0 %v30
    %54 = vmatpush.msra.mxu0 %v29
    %55 = vmatpush.msra.mxu0 %v28
    %56 = vmatmul.f32.gmra.mxu0 %v38
    %v57 = vpop.f32.mrf.mxu0
    %v58 = vadd.f32 %v34, %v57
    %59 = vdwg.mxu0
    %v60 = vmax.f32 %v58, 0.0
    %v61 = vld [vmem:[%s3] sm:$0xff]
    %v62 = vld [vmem:[%s3 + $0x8] sm:$0xff]
    %v63 = vld [vmem:[%s3 + $0x10] sm:$0xff]
    %v64 = vld [vmem:[%s3 + $0x18] sm:$0xff]
    %v65 = vld [vmem:[%s3 + $0x20] sm:$0xff]
    %v66 = vld [vmem:[%s3 + $0x28] sm:$0xff]
    %v67 = vld [vmem:[%s3 + $0x30] sm:$0xff]
    %v68 = vld [vmem:[%s3 + $0x38] sm:$0xff]
    %v69 = vld [vmem:[%s4] sm:$0x1]
    %v71 = vperm.slane %v69, 0
    %vm73 = vcmask 523264
    %v75 = vsel %vm73, %v60, 0
    %77 = vmatpush.msra.mxu0 0.0
    %78 = vmatpush.msra.mxu0 0.0
    %79 = vmatpush.msra.mxu0 0.0
    %80 = vmatpush.msra.mxu0 0.0
    %81 = vmatpush.msra.mxu0 0.0
    %82 = vmatpush.msra.mxu0 0.0
    %83 = vmatpush.msra.mxu0 0.0
    %84 = vmatpush.msra.mxu0 0.0
    %85 = vmatpush.msra.mxu0 %v68
    %86 = vmatpush.msra.mxu0 %v67
    %87 = vmatpush.msra.mxu0 %v66
    %88 = vmatpush.msra.mxu0 %v65
    %89 = vmatpush.msra.mxu0 %v64
    %90 = vmatpush.msra.mxu0 %v63
    %91 = vmatpush.msra.mxu0 %v62
    %92 = vmatpush.msra.mxu0 %v61
    %93 = vmatmul.f32.gmra.mxu0 %v75
    %v94 = vpop.f32.mrf.mxu0
    %v95 = vadd.f32 %v71, %v94
    %96 = vdwg.mxu0
    %v97 = vadd.f32 %v27, %v95
    %v98 = vsel %vm36, %v97, 0.0
    %99 = vadd.xlane.f32.xlu0 %v98
    %v100 = vpop.xlane.xlu0 %99
    %v101 = vmul.f32 %v97, %v97
    %v102 = vsel %vm36, %v101, 0.0
    %103 = vadd.xlane.f32.xlu0 %v102
    %v104 = vpop.xlane.xlu0 %103
    %v105 = vmul.f32 %v100, 0.03125
    %v106 = vmul.f32 %v104, 0.03125
    %v107 = vmul.f32 %v105, %v105
    %v108 = vsub.f32 %v106, %v107
    %v109 = vmax.f32 %v108, 0.0
    %v110 = vsub.f32 %v97, %v105
    %v111 = vadd.f32 %v109, 1e-05
    %v112 = vrsqrt.pop %v111
    %v113 = vmul.f32 %v112, %v111
    %v114 = vmul.f32 %v113, %v112
    %v115 = vmul.f32 0.5, %v114
    %v116 = vsub.f32 1.5, %v115
    %v117 = vmul.f32 %v112, %v116
    %vm118 = vweird.f32 %v111
    %vm119 = vweird.f32 %v112
    %vm120 = vmor %vm118, %vm119
    %v121 = vsel %vm120, %v112, %v117
    %v122 = vmul.f32 %v110, %v121
    %v123 = vld [vmem:[%s5] sm:$0x1]
    %v125 = vperm.slane %v123, 0
    %v127 = vmul.f32 %v122, %v125
    %v128 = vld [vmem:[%s6] sm:$0x1]
    %v130 = vperm.slane %v128, 0
    %v132 = vadd.f32 %v127, %v130
    %133 = vst.msk [vmem:[#allocation2] sm:$0xff] %vm36, %v132
    // Predicated region
    $region30: #{tpu_custom_call.1} parent=1 // pred_check
      _
    $region31: #{tpu_custom_call.1} parent=1 // pred_check_branch
      %135 = sbr.rel (0) target = $region33
    $region32: #{tpu_custom_call.1} parent=1 // pred_region
      %137 = vsyncadd [#allocation3], 0
      %s139 = sshll.u32 [#allocation2], 4
      %s140 = int_to_ptr.vmem [resolvable:$true] %s139
      %s141 = sshll.u32 %s7, 4
      %s142 = int_to_ptr.hbm [resolvable:$true] %s141
      %144 = dma.vmem_to_hbm [thread:$0]  %s140, 128, %s142, [#allocation3]
    $region33: #{tpu_custom_call.1} parent=1 // pred_fallthru
      _
    // Predicated region
    $region34: #{tpu_custom_call.1} parent=1 // pred_check
      _
    $region35: #{tpu_custom_call.1} parent=1 // pred_check_branch
      %146 = sbr.rel (0) target = $region37
    $region36: #{tpu_custom_call.1} parent=1 // pred_region
      %148 = dma.done [#allocation3], 128
    $region37: #{tpu_custom_call.1} parent=1 // pred_fallthru
      _
    %149 = vsyncpa [#allocation3], 1

</llo_original>
